<compile_context>
chip_gen: v5e
topology: v5e:2x2
jax: 0.10.0
libtpu: 0.0.40
codegen_flags: <defaults>
</compile_context>

<pallas_src>
import jax
import jax.numpy as jnp
from jax.experimental import pallas as pl
from jax.experimental.pallas import tpu as pltpu

_HIDDEN_ALIGN = 128   # hidden dim 100 -> 128 (lane-dense MXU/VPU tiles)
_TB_MAX = 4096        # batch-tile cap (rows), multiple of 8


def _round_up(x, m):
    return (x + m - 1) // m * m


def learner_kernel(x_ref, w1_ref, b1_ref, w2_ref, b2_ref, o_ref):
    # fc1 + ReLU: (TB, F) @ (F, Hp) on the MXU, bias/ReLU on the VPU.
    h = jnp.dot(x_ref[...], w1_ref[...], preferred_element_type=jnp.float32)
    h = jnp.maximum(h + b1_ref[...], 0.0)
    # out layer + tanh: (TB, Hp) @ (Hp, A); tanh lowers to the EUP and only
    # touches A (=n_actions) lanes now.
    y = jnp.dot(h, w2_ref[...], preferred_element_type=jnp.float32)
    o_ref[...] = jnp.tanh(y + b2_ref[...]).astype(o_ref.dtype)


def pad_params(w1, b1, w2, b2):
    """Zero-pad ONLY the hidden dim (100 -> 128). F and A stay logical.

    Padding is exact: padded hidden columns of w1/b1 are zero -> ReLU gives 0,
    and the matching zero rows of w2 contribute nothing.
    """
    F, H = w1.shape
    A = w2.shape[1]
    Hp = _round_up(H, _HIDDEN_ALIGN)
    w1p = jnp.zeros((F, Hp), w1.dtype).at[:, :H].set(w1)
    b1p = jnp.zeros((1, Hp), b1.dtype).at[:, :H].set(b1)
    w2p = jnp.zeros((Hp, A), w2.dtype).at[:H, :].set(w2)
    b2p = b2.reshape(1, A)
    return w1p, b1p, w2p, b2p


def learner_forward(x, w1p, b1p, w2p, b2p):
    """x: (B, F) f32 (unpadded); params hidden-padded via pad_params.

    Returns (B, n_actions) f32.
    """
    B, F = x.shape
    Fw, Hp = w1p.shape
    A = w2p.shape[1]
    assert F == Fw, (F, Fw)

    # Batch tile: big enough to amortize per-step overhead, small enough that
    # the parallel batch axis has >= 2 steps (so v7x's 2 TCs both get work).
    TB = min(_TB_MAX, max(8, _round_up(pl.cdiv(B, 2), 8)))
    grid = (pl.cdiv(B, TB),)

    # Cost estimate for the unpadded I/O shapes (Hp used for actual FLOPs).
    flops = 2 * B * (F * Hp + Hp * A)
    bytes_accessed = 4 * (B * F + F * Hp + Hp + Hp * A + A + B * A)

    return pl.pallas_call(
        learner_kernel,
        out_shape=jax.ShapeDtypeStruct((B, A), jnp.float32),
        grid_spec=pltpu.PrefetchScalarGridSpec(
            num_scalar_prefetch=0,
            grid=grid,
            in_specs=[
                # x: tiled over batch (ragged last tile handled by Pallas),
                # last dim == full array dim so the layout rule is satisfied.
                pl.BlockSpec((TB, F), lambda i: (i, 0)),
                # Weights/biases: constant index_map -> VMEM-resident across
                # all grid steps while x/out are double-buffered.
                pl.BlockSpec((F, Hp), lambda i: (0, 0)),
                pl.BlockSpec((1, Hp), lambda i: (0, 0)),
                pl.BlockSpec((Hp, A), lambda i: (0, 0)),
                pl.BlockSpec((1, A), lambda i: (0, 0)),
            ],
            # (TB, A) block of a (B, A) array spans full rows -> contiguous
            # writeback DMA, no 128-wide padded output slab.
            out_specs=pl.BlockSpec((TB, A), lambda i: (i, 0)),
        ),
        compiler_params=pltpu.CompilerParams(
            dimension_semantics=("parallel",)),
        cost_estimate=pl.CostEstimate(
            flops=flops,
            transcendentals=B * A,
            bytes_accessed=bytes_accessed),
    )(x, w1p, b1p, w2p, b2p)


def init_params(key, n_features, n_actions, hidden=100):
    """Deterministic synthetic init matching the PyTorch shapes/init scheme."""
    k1, k2, k3, k4 = jax.random.split(key, 4)
    # PyTorch: weight.data.normal_(0, 0.1); bias keeps the default Linear init
    # (uniform(-1/sqrt(fan_in), 1/sqrt(fan_in))).
    w1 = jax.random.normal(k1, (n_features, hidden), jnp.float32) * 0.1
    b1 = jax.random.uniform(
        k2, (1, hidden), jnp.float32,
        minval=-1.0 / jnp.sqrt(n_features), maxval=1.0 / jnp.sqrt(n_features))
    w2 = jax.random.normal(k3, (hidden, n_actions), jnp.float32) * 0.1
    b2 = jax.random.uniform(
        k4, (1, n_actions), jnp.float32,
        minval=-1.0 / jnp.sqrt(hidden), maxval=1.0 / jnp.sqrt(hidden))
    return w1, b1, w2, b2


if __name__ == "__main__":
    key = jax.random.PRNGKey(0)
    kx, kp = jax.random.split(key)

    batch = 8
    n_features = 32
    n_actions = 4

    x = jax.random.normal(kx, (batch, n_features), jnp.float32)
    w1, b1, w2, b2 = init_params(kp, n_features, n_actions)

    # Hidden-dim padding done once (amortized across all rollout calls).
    w1p, b1p, w2p, b2p = pad_params(w1, b1, w2, b2)

    out = learner_forward(x, w1p, b1p, w2p, b2p)
    out = jax.block_until_ready(out)

    # Pure-JAX reference check against the unpadded math.
    ref = jnp.tanh(jnp.maximum(x @ w1 + b1, 0.0) @ w2 + b2)
    assert out.shape == (batch, n_actions)
    assert jnp.allclose(out, ref, atol=1e-5, rtol=1e-5)

    print("KERNEL_OK")
</pallas_src>

<mosaic_0001>
module attributes {stable_mosaic.version = 11 : i64} {
  func.func @learner_kernel(%arg0: i32, %arg1: memref<8x32xf32, #tpu.memory_space<vmem>>, %arg2: memref<32x128xf32, #tpu.memory_space<vmem>>, %arg3: memref<1x128xf32, #tpu.memory_space<vmem>>, %arg4: memref<128x4xf32, #tpu.memory_space<vmem>>, %arg5: memref<1x4xf32, #tpu.memory_space<vmem>>, %arg6: memref<8x4xf32, #tpu.memory_space<vmem>>) attributes {dimension_semantics = [#tpu.dimension_semantics<parallel>], iteration_bounds = array<i64: 1>, scalar_prefetch = 0 : i64, scratch_operands = 0 : i64, tpu.core_type = #tpu.core_type<tc>, window_params = [{transform_indices = @transform_0, window_bounds = array<i64: 8, 32>}, {pipeline_mode = #tpu.pipeline_mode<synchronous>, transform_indices = @transform_1, window_bounds = array<i64: 32, 128>}, {pipeline_mode = #tpu.pipeline_mode<synchronous>, transform_indices = @transform_2, window_bounds = array<i64: 1, 128>}, {pipeline_mode = #tpu.pipeline_mode<synchronous>, transform_indices = @transform_3, window_bounds = array<i64: 128, 4>}, {pipeline_mode = #tpu.pipeline_mode<synchronous>, transform_indices = @transform_4, window_bounds = array<i64: 1, 4>}, {transform_indices = @transform_5, window_bounds = array<i64: 8, 4>}]} {
    %c0 = arith.constant 0 : index
    %c0_0 = arith.constant 0 : index
    %0 = vector.load %arg1[%c0, %c0_0] : memref<8x32xf32, #tpu.memory_space<vmem>>, vector<8x32xf32>
    %c0_1 = arith.constant 0 : index
    %c0_2 = arith.constant 0 : index
    %1 = vector.load %arg2[%c0_1, %c0_2] : memref<32x128xf32, #tpu.memory_space<vmem>>, vector<32x128xf32>
    %cst = arith.constant dense<0.000000e+00> : vector<8x128xf32>
    %2 = tpu.matmul %0, %1, %cst {dimension_numbers = #tpu.dot_dimension_numbers<[1], [0], [0], [1], [0, 0, 1, 1], [], []>} : vector<8x32xf32>, vector<32x128xf32>, vector<8x128xf32> -> vector<8x128xf32>
    %c0_3 = arith.constant 0 : index
    %c0_4 = arith.constant 0 : index
    %3 = vector.load %arg3[%c0_3, %c0_4] : memref<1x128xf32, #tpu.memory_space<vmem>>, vector<1x128xf32>
    %4 = vector.broadcast %3 : vector<1x128xf32> to vector<8x128xf32>
    %5 = arith.addf %2, %4 : vector<8x128xf32>
    %cst_5 = arith.constant 0.000000e+00 : f32
    %6 = vector.broadcast %cst_5 : f32 to vector<8x128xf32>
    %7 = arith.maximumf %5, %6 : vector<8x128xf32>
    %c0_6 = arith.constant 0 : index
    %c0_7 = arith.constant 0 : index
    %8 = vector.load %arg4[%c0_6, %c0_7] : memref<128x4xf32, #tpu.memory_space<vmem>>, vector<128x4xf32>
    %cst_8 = arith.constant dense<0.000000e+00> : vector<8x4xf32>
    %9 = tpu.matmul %7, %8, %cst_8 {dimension_numbers = #tpu.dot_dimension_numbers<[1], [0], [0], [1], [0, 0, 1, 1], [], []>} : vector<8x128xf32>, vector<128x4xf32>, vector<8x4xf32> -> vector<8x4xf32>
    %c0_9 = arith.constant 0 : index
    %c0_10 = arith.constant 0 : index
    %10 = vector.load %arg5[%c0_9, %c0_10] : memref<1x4xf32, #tpu.memory_space<vmem>>, vector<1x4xf32>
    %11 = vector.broadcast %10 : vector<1x4xf32> to vector<8x4xf32>
    %12 = arith.addf %9, %11 : vector<8x4xf32>
    %13 = math.tanh %12 : vector<8x4xf32>
    %c0_11 = arith.constant 0 : index
    %c0_12 = arith.constant 0 : index
    %14 = vector.load %arg6[%c0_11, %c0_12] : memref<8x4xf32, #tpu.memory_space<vmem>>, vector<8x4xf32>
    tpu.vector_store %arg6[%c0_11, %c0_12], %13 {strides = array<i32>} : memref<8x4xf32, #tpu.memory_space<vmem>>, vector<8x4xf32>,
    return
  }
  func.func @transform_0(%arg0: i32) -> (i32, i32) {
    %c0_i32 = arith.constant 0 : i32
    %c0_i32_0 = arith.constant 0 : i32
    return %arg0, %c0_i32 : i32, i32
  }
  func.func @transform_1(%arg0: i32) -> (i32, i32) {
    %c0_i32 = arith.constant 0 : i32
    %c0_i32_0 = arith.constant 0 : i32
    %c0_i32_1 = arith.constant 0 : i32
    return %c0_i32, %c0_i32_0 : i32, i32
  }
  func.func @transform_2(%arg0: i32) -> (i32, i32) {
    %c0_i32 = arith.constant 0 : i32
    %c0_i32_0 = arith.constant 0 : i32
    %c0_i32_1 = arith.constant 0 : i32
    return %c0_i32, %c0_i32_0 : i32, i32
  }
  func.func @transform_3(%arg0: i32) -> (i32, i32) {
    %c0_i32 = arith.constant 0 : i32
    %c0_i32_0 = arith.constant 0 : i32
    %c0_i32_1 = arith.constant 0 : i32
    return %c0_i32, %c0_i32_0 : i32, i32
  }
  func.func @transform_4(%arg0: i32) -> (i32, i32) {
    %c0_i32 = arith.constant 0 : i32
    %c0_i32_0 = arith.constant 0 : i32
    %c0_i32_1 = arith.constant 0 : i32
    return %c0_i32, %c0_i32_0 : i32, i32
  }
  func.func @transform_5(%arg0: i32) -> (i32, i32) {
    %c0_i32 = arith.constant 0 : i32
    %c0_i32_0 = arith.constant 0 : i32
    return %arg0, %c0_i32 : i32, i32
  }
}

</mosaic_0001>

<llo_original>
// kernel: tpu_custom_call.1
$region0: #{tpu_custom_call.1}
  #allocation0 [shape = 'u32[]', space=smem, size = 0x4, offset = 0x4, fixed_abs, tag = 'smem constant byte address 0x4 - core index']
  #allocation1 [shape = 'u32[72,128]{1,0:T(1,128)}', space=vmem, size = 0x9000, scoped, tag = 'internal scratch']
  %s0 = inlined_call_operand.vmem [shape: f32[8,32], index: 0, kind: input, shape index: {}]
  %s1 = inlined_call_operand.vmem [shape: f32[32,128], index: 1, kind: input, shape index: {}]
  %s2 = inlined_call_operand.vmem [shape: f32[1,128], index: 2, kind: input, shape index: {}]
  %s3 = inlined_call_operand.vmem [shape: f32[128,4], index: 3, kind: input, shape index: {}]
  %s4 = inlined_call_operand.vmem [shape: f32[1,4], index: 4, kind: input, shape index: {}]
  %s5 = inlined_call_operand.vmem [shape: f32[8,4], index: 5, kind: output, shape index: {}]
  %s6 = sld [smem:[#allocation0]]
  $region30: #{tpu_custom_call.1} parent=0
    _
  %s8 = ssub.s32 1, %s6
  %s9 = scalar_select 0, %s8, %s6
  // Predicated region
  $region2: #{tpu_custom_call.1} parent=0 // pred_check
    _
  $region3: #{tpu_custom_call.1} parent=0 // pred_check_branch
    %11 = sbr.rel (0) target = $region5
  $region4: #{tpu_custom_call.1} parent=0 // pred_region
    _
  $region5: #{tpu_custom_call.1} parent=0 // pred_fallthru
    _
  // Predicated region
  $region6: #{tpu_custom_call.1} parent=0 // pred_check
    _
  $region7: #{tpu_custom_call.1} parent=0 // pred_check_branch
    %13 = sbr.rel (0) target = $region9
  $region8: #{tpu_custom_call.1} parent=0 // pred_region
    _
  $region9: #{tpu_custom_call.1} parent=0 // pred_fallthru
    _
  // Predicated region
  $region10: #{tpu_custom_call.1} parent=0 // pred_check
    _
  $region11: #{tpu_custom_call.1} parent=0 // pred_check_branch
    %15 = sbr.rel (0) target = $region13
  $region12: #{tpu_custom_call.1} parent=0 // pred_region
    _
  $region13: #{tpu_custom_call.1} parent=0 // pred_fallthru
    _
  // Predicated region
  $region14: #{tpu_custom_call.1} parent=0 // pred_check
    _
  $region15: #{tpu_custom_call.1} parent=0 // pred_check_branch
    %17 = sbr.rel (0) target = $region17
  $region16: #{tpu_custom_call.1} parent=0 // pred_region
    _
  $region17: #{tpu_custom_call.1} parent=0 // pred_fallthru
    _
  // Predicated region
  $region18: #{tpu_custom_call.1} parent=0 // pred_check
    _
  $region19: #{tpu_custom_call.1} parent=0 // pred_check_branch
    %19 = sbr.rel (0) target = $region21
  $region20: #{tpu_custom_call.1} parent=0 // pred_region
    _
  $region21: #{tpu_custom_call.1} parent=0 // pred_fallthru
    _
  %v20 = vld [vmem:[%s0] sm:$0xff]
  %v21 = vld [vmem:[%s1] sm:$0xff]
  %v22 = vld [vmem:[%s1 + $0x8] sm:$0xff]
  %v23 = vld [vmem:[%s1 + $0x10] sm:$0xff]
  %v24 = vld [vmem:[%s1 + $0x18] sm:$0xff]
  %v25 = vld [vmem:[%s2] sm:$0x1]
  %v27 = vperm.slane %v25, 0
  %vm29 = vcmask 261120
  %v31 = vsel %vm29, %v20, 0
  %33 = vmatpush.msra.mxu0 0.0
  %34 = vmatpush.msra.mxu0 0.0
  %35 = vmatpush.msra.mxu0 0.0
  %36 = vmatpush.msra.mxu0 0.0
  %37 = vmatpush.msra.mxu0 0.0
  %38 = vmatpush.msra.mxu0 0.0
  %39 = vmatpush.msra.mxu0 0.0
  %40 = vmatpush.msra.mxu0 0.0
  %41 = vmatpush.msra.mxu0 0.0
  %42 = vmatpush.msra.mxu0 0.0
  %43 = vmatpush.msra.mxu0 0.0
  %44 = vmatpush.msra.mxu0 0.0
  %45 = vmatpush.msra.mxu0 %v24
  %46 = vmatpush.msra.mxu0 %v23
  %47 = vmatpush.msra.mxu0 %v22
  %48 = vmatpush.msra.mxu0 %v21
  %49 = vmatmul.f32.gmra.mxu0 %v31
  %v50 = vpop.f32.mrf.mxu0
  %v51 = vadd.f32 %v27, %v50
  %52 = vdwg.mxu0
  %v53 = vmax.f32 %v51, 0.0
  %v54 = vld [vmem:[%s3] sm:$0xff]
  %v55 = vld [vmem:[%s3 + $0x8] sm:$0xff]
  %v56 = vld [vmem:[%s3 + $0x10] sm:$0xff]
  %v57 = vld [vmem:[%s3 + $0x18] sm:$0xff]
  %v58 = vld [vmem:[%s3 + $0x20] sm:$0xff]
  %v59 = vld [vmem:[%s3 + $0x28] sm:$0xff]
  %v60 = vld [vmem:[%s3 + $0x30] sm:$0xff]
  %v61 = vld [vmem:[%s3 + $0x38] sm:$0xff]
  %v62 = vld [vmem:[%s3 + $0x40] sm:$0xff]
  %v63 = vld [vmem:[%s3 + $0x48] sm:$0xff]
  %v64 = vld [vmem:[%s3 + $0x50] sm:$0xff]
  %v65 = vld [vmem:[%s3 + $0x58] sm:$0xff]
  %v66 = vld [vmem:[%s3 + $0x60] sm:$0xff]
  %v67 = vld [vmem:[%s3 + $0x68] sm:$0xff]
  %v68 = vld [vmem:[%s3 + $0x70] sm:$0xff]
  %v69 = vld [vmem:[%s3 + $0x78] sm:$0xff]
  %v70 = vld [vmem:[%s4] sm:$0x1]
  %v72 = vperm.slane %v70, 0
  %74 = vmatpush.msra.mxu0 %v69
  %75 = vmatpush.msra.mxu0 %v68
  %76 = vmatpush.msra.mxu0 %v67
  %77 = vmatpush.msra.mxu0 %v66
  %78 = vmatpush.msra.mxu0 %v65
  %79 = vmatpush.msra.mxu0 %v64
  %80 = vmatpush.msra.mxu0 %v63
  %81 = vmatpush.msra.mxu0 %v62
  %82 = vmatpush.msra.mxu0 %v61
  %83 = vmatpush.msra.mxu0 %v60
  %84 = vmatpush.msra.mxu0 %v59
  %85 = vmatpush.msra.mxu0 %v58
  %86 = vmatpush.msra.mxu0 %v57
  %87 = vmatpush.msra.mxu0 %v56
  %88 = vmatpush.msra.mxu0 %v55
  %89 = vmatpush.msra.mxu0 %v54
  %90 = vmatmul.f32.gmra.mxu0 %v53
  %v91 = vpop.f32.mrf.mxu0
  %v92 = vadd.f32 %v72, %v91
  %93 = vdwg.mxu0
  %v94 = vtanh.pop %v92
  %vm95 = vcmask 31744
  %96 = vst.msk [vmem:[%s5] sm:$0xff] %vm95, %v94
  // Predicated region
  $region22: #{tpu_custom_call.1} parent=0 // pred_check
    _
  $region23: #{tpu_custom_call.1} parent=0 // pred_check_branch
    %98 = sbr.rel (0) target = $region25
  $region24: #{tpu_custom_call.1} parent=0 // pred_region
    _
  $region25: #{tpu_custom_call.1} parent=0 // pred_fallthru
    _
  // Predicated region
  $region26: #{tpu_custom_call.1} parent=0 // pred_check
    _
  $region27: #{tpu_custom_call.1} parent=0 // pred_check_branch
    %100 = sbr.rel (0) target = $region29
  $region28: #{tpu_custom_call.1} parent=0 // pred_region
    _
  $region29: #{tpu_custom_call.1} parent=0 // pred_fallthru
    _

</llo_original>
